<compile_context>
chip_gen: v7x
topology: tpu7x:2x2x1
jax: 0.10.0
libtpu: 0.0.40
codegen_flags: <defaults>
</compile_context>

<pallas_src>
import functools

import jax
import jax.numpy as jnp
from jax import lax
from jax.experimental import pallas as pl
from jax.experimental.pallas import tpu as pltpu


BN_EPS = 1e-5


def _round_up(x, m):
    return (x + m - 1) // m * m


def _cdiv(a, b):
    return -(-a // b)


def _branches(p_ref, w_ref, cin):
    """Conv + max-pool on one (9*Cin, tR) patch tile.

    p_ref: (9*Cin, tR) bf16 patches, channel-major rows (ci, kh, kw); -inf
           marks pooling border padding; columns beyond the true pixel count
           are all-zero.
    w_ref: (Cmain, 9*Cin) f32 conv weight, same column order.
    Returns (main (Cmain, tR) f32, sec (Cin, tR) f32).
    """
    # Upcast once right after the bf16 load (v5e-safe); HBM traffic stays half.
    p = p_ref[...].astype(jnp.float32)
    # Conv sees zero padding: replace the -inf sentinels before the matmul.
    pc = jnp.where(p == -jnp.inf, jnp.float32(0.0), p)
    # Small-K MXU matmul; default precision is plenty (kernel is HBM-bound).
    main = jnp.dot(w_ref[...], pc, preferred_element_type=jnp.float32)
    # Max-pool = max over the 9 contiguous taps of each channel; -inf at the
    # border never wins because the centre tap of every window is a real pixel.
    sec = jnp.concatenate(
        [jnp.max(p[ci * 9:(ci + 1) * 9, :], axis=0, keepdims=True)
         for ci in range(cin)], axis=0)
    return main, sec


def _stats_kernel(p_ref, w_ref, sum_ref, sumsq_ref, *, cin):
    """Pass 1: per-tile, per-channel sum and sum-of-squares partials."""
    main, sec = _branches(p_ref, w_ref, cin)
    # Sublane-only concat; each store is one full (Cout, 1) block.
    sum_ref[...] = jnp.concatenate(
        [jnp.sum(main, axis=1, keepdims=True),
         jnp.sum(sec, axis=1, keepdims=True)], axis=0)
    sumsq_ref[...] = jnp.concatenate(
        [jnp.sum(main * main, axis=1, keepdims=True),
         jnp.sum(sec * sec, axis=1, keepdims=True)], axis=0)


def _apply_kernel(p_ref, w_ref, scale_ref, shift_ref, o_ref, *, cin, cmain):
    """Pass 2: recompute conv+pool, apply folded BN affine + ReLU."""
    main, sec = _branches(p_ref, w_ref, cin)
    y_main = main * scale_ref[0:cmain, :] + shift_ref[0:cmain, :]
    y_sec = sec * scale_ref[cmain:cmain + cin, :] + shift_ref[cmain:cmain + cin, :]
    # Build the full (Cout, tR) tile and emit one unmasked full-block store
    # (instead of two partial stores straddling the 8-sublane boundary).
    y = jnp.concatenate([y_main, y_sec], axis=0)
    o_ref[...] = jnp.maximum(y, 0.0).astype(o_ref.dtype)


@functools.partial(jax.jit, static_argnames=("max_tr",))
def initial_block(x, conv_w, gamma, beta, *, max_tr=8192):
    """x: (N, Cin, H, W) NCHW float32 -> (N, Cout, Ho, Wo) NCHW float32."""
    N, Cin, H, W = x.shape
    Cmain = conv_w.shape[0]           # out_channels - 3
    Cout = Cmain + Cin
    assert gamma.shape == (Cout,) and beta.shape == (Cout,)
    Ho = (H + 2 - 3) // 2 + 1
    Wo = (W + 2 - 3) // 2 + 1
    HoWo = Ho * Wo
    K = 9 * Cin

    # Lane-dense 128-multiple pixel tile, as large as reasonable: fewer grid
    # steps + long contiguous DMA rows; double-buffered working set at 8192
    # lanes is ~2 MiB, well inside every generation's VMEM (v7x 64 MiB incl.).
    tR = min(max_tr, _round_up(HoWo, 128))
    nrt = _cdiv(HoWo, tR)
    if N * nrt < 2 and HoWo > 128:
        # v7x has 2 TensorCores: keep >= 2 (parallel) grid steps so both work.
        tR = _round_up(_cdiv(HoWo, 2), 128)
        nrt = _cdiv(HoWo, tR)
    L = nrt * tR

    # ---- glue: strided 3x3 taps, transposed im2col, bf16 slab in HBM --------
    # TODO(synk): move the tap extraction fully in-kernel (stride-2 lane
    # extraction from raw NCHW) to drop the slab's HBM traffic entirely.
    xp = jnp.pad(x.astype(jnp.bfloat16), ((0, 0), (0, 0), (1, 1), (1, 1)),
                 constant_values=-jnp.inf)          # -inf sentinel at borders
    taps = []
    for kh in range(3):
        for kw in range(3):
            t = xp[:, :, kh:kh + 2 * Ho:2, kw:kw + 2 * Wo:2]   # (N, Cin, Ho, Wo)
            taps.append(t.reshape(N, Cin, HoWo))
    patches = jnp.stack(taps, axis=2).reshape(N, K, HoWo)      # rows=(ci,kh,kw)
    # Zero-pad the pixel axis: zero columns contribute nothing to the BN sums,
    # so no in-kernel masking is required.
    patches = jnp.pad(patches, ((0, 0), (0, 0), (0, L - HoWo)))

    # Conv weight (Cmain, Cin, 3, 3) -> (Cmain, 9*Cin); columns already (ci,kh,kw).
    w_mat = conv_w.reshape(Cmain, K).astype(jnp.float32)

    grid = (N, nrt)
    patch_spec = pl.BlockSpec((None, K, tR), lambda n, r: (n, 0, r))
    # NOTE: if an xprof trace ever shows exposed DMA between grid steps, add
    # pipeline_mode=pl.Buffered(3) to patch_spec (per-tile compute is tiny).
    w_spec = pl.BlockSpec((Cmain, K), lambda n, r: (0, 0))
    cparams = pltpu.CompilerParams(
        dimension_semantics=("parallel", "parallel"),
        vmem_limit_bytes=32 * 1024 * 1024)

    # ---- pass 1: per-tile BN partial statistics ------------------------------
    stat_spec = pl.BlockSpec((None, None, Cout, 1), lambda n, r: (n, r, 0, 0))
    part_sum, part_sq = pl.pallas_call(
        functools.partial(_stats_kernel, cin=Cin),
        out_shape=(jax.ShapeDtypeStruct((N, nrt, Cout, 1), jnp.float32),
                   jax.ShapeDtypeStruct((N, nrt, Cout, 1), jnp.float32)),
        grid=grid,
        in_specs=[patch_spec, w_spec],
        out_specs=(stat_spec, stat_spec),
        compiler_params=cparams,
    )(patches, w_mat)

    # NOTE: single-pass E[x^2]-E[x]^2 is fine here (post-conv/pool activations
    # are O(1)); switch to shifted/Welford partials if reused at large scales.
    count = jnp.float32(N * HoWo)
    mean = jnp.sum(part_sum, axis=(0, 1)).reshape(Cout) / count
    var = jnp.maximum(
        jnp.sum(part_sq, axis=(0, 1)).reshape(Cout) / count - mean * mean, 0.0)
    g_inv = gamma * lax.rsqrt(var + BN_EPS)
    scale = g_inv.reshape(Cout, 1)
    shift = (beta - mean * g_inv).reshape(Cout, 1)

    # ---- pass 2: conv + pool + fused BN affine + ReLU ------------------------
    out = pl.pallas_call(
        functools.partial(_apply_kernel, cin=Cin, cmain=Cmain),
        out_shape=jax.ShapeDtypeStruct((N, Cout, L), jnp.float32),
        grid=grid,
        in_specs=[patch_spec, w_spec,
                  pl.BlockSpec((Cout, 1), lambda n, r: (0, 0)),
                  pl.BlockSpec((Cout, 1), lambda n, r: (0, 0))],
        out_specs=pl.BlockSpec((None, Cout, tR), lambda n, r: (n, 0, r)),
        compiler_params=cparams,
    )(patches, w_mat, scale, shift)

    # Output is already channel-major (NCHW) -- just drop the pixel padding.
    return out[:, :, :HoWo].reshape(N, Cout, Ho, Wo)


def _reference(x, conv_w, gamma, beta):
    """Pure-JAX reference mirroring the PyTorch forward (training-mode BN)."""
    main = lax.conv_general_dilated(
        x, conv_w, window_strides=(2, 2), padding=((1, 1), (1, 1)),
        dimension_numbers=("NCHW", "OIHW", "NCHW"),
        precision=lax.Precision.HIGHEST,
    )
    sec = lax.reduce_window(
        x, -jnp.inf, lax.max,
        window_dimensions=(1, 1, 3, 3), window_strides=(1, 1, 2, 2),
        padding=((0, 0), (0, 0), (1, 1), (1, 1)),
    )
    y = jnp.concatenate([main, sec], axis=1)
    mean = jnp.mean(y, axis=(0, 2, 3), keepdims=True)
    var = jnp.mean((y - mean) ** 2, axis=(0, 2, 3), keepdims=True)
    y = (y - mean) / jnp.sqrt(var + BN_EPS)
    y = y * gamma.reshape(1, -1, 1, 1) + beta.reshape(1, -1, 1, 1)
    return jnp.maximum(y, 0.0)


if __name__ == "__main__":
    def run_case(key, N, Cin, H, W, Cout, max_tr, tol):
        Cmain = Cout - 3
        kx, kw, kg, kb = jax.random.split(key, 4)
        x = jax.random.normal(kx, (N, Cin, H, W), dtype=jnp.float32)
        conv_w = 0.1 * jax.random.normal(kw, (Cmain, Cin, 3, 3), dtype=jnp.float32)
        gamma = 1.0 + 0.1 * jax.random.normal(kg, (Cout,), dtype=jnp.float32)
        beta = 0.1 * jax.random.normal(kb, (Cout,), dtype=jnp.float32)
        out = jax.block_until_ready(
            initial_block(x, conv_w, gamma, beta, max_tr=max_tr))
        ref = jax.block_until_ready(_reference(x, conv_w, gamma, beta))
        assert out.shape == ((N, Cout, (H + 1) // 2, (W + 1) // 2)), out.shape
        err = float(jnp.max(jnp.abs(out - ref)))
        # Tolerance leaves headroom for the bf16 patch slab (inputs keep ~3
        # decimal digits); post-BN values are O(1) so structural bugs still trip.
        assert err < tol, (N, H, W, err)

    key = jax.random.PRNGKey(0)
    k1, k2 = jax.random.split(key)
    # InitialBlock(in_channels=3, out_channels=16): 13-ch conv + 3-ch max-pool.
    run_case(k1, N=2, Cin=3, H=16, W=16, Cout=16, max_tr=8192, tol=5e-2)
    # Multi-tile path: HoWo=225 with a 128-lane tile cap -> 2 pixel tiles,
    # padded last tile, cross-tile BN stats reduction actually exercised.
    run_case(k2, N=1, Cin=3, H=30, W=30, Cout=16, max_tr=128, tol=5e-2)

    print("KERNEL_OK")
</pallas_src>

<mosaic_0001>
module attributes {stable_mosaic.version = 11 : i64} {
  func.func @_stats_kernel(%arg0: i32, %arg1: i32, %arg2: memref<1x27x128xbf16, #tpu.memory_space<vmem>>, %arg3: memref<13x27xf32, #tpu.memory_space<vmem>>, %arg4: memref<1x1x16x1xf32, #tpu.memory_space<vmem>>, %arg5: memref<1x1x16x1xf32, #tpu.memory_space<vmem>>) attributes {dimension_semantics = [#tpu.dimension_semantics<parallel>, #tpu.dimension_semantics<parallel>], iteration_bounds = array<i64: 2, 1>, scalar_prefetch = 0 : i64, scratch_operands = 0 : i64, tpu.core_type = #tpu.core_type<tc>, window_params = [{transform_indices = @transform_0, window_bounds = array<i64: 1, 27, 128>}, {pipeline_mode = #tpu.pipeline_mode<synchronous>, transform_indices = @transform_1, window_bounds = array<i64: 13, 27>}, {transform_indices = @transform_2, window_bounds = array<i64: 1, 1, 16, 1>}, {transform_indices = @transform_3, window_bounds = array<i64: 1, 1, 16, 1>}]} {
    %c0 = arith.constant 0 : index
    %c0_0 = arith.constant 0 : index
    %c0_1 = arith.constant 0 : index
    %0 = vector.load %arg2[%c0, %c0_0, %c0_1] : memref<1x27x128xbf16, #tpu.memory_space<vmem>>, vector<1x27x128xbf16>
    %1 = vector.shape_cast %0 : vector<1x27x128xbf16> to vector<27x128xbf16>
    %2 = arith.extf %1 : vector<27x128xbf16> to vector<27x128xf32>
    %cst = arith.constant 0xFF800000 : f32
    %3 = vector.broadcast %cst : f32 to vector<27x128xf32>
    %4 = arith.cmpf oeq, %2, %3 : vector<27x128xf32>
    %cst_2 = arith.constant 0.000000e+00 : f32
    %5 = vector.broadcast %cst_2 : f32 to vector<27x128xf32>
    %6 = arith.select %4, %5, %2 : vector<27x128xi1>, vector<27x128xf32>
    %c0_3 = arith.constant 0 : index
    %c0_4 = arith.constant 0 : index
    %7 = vector.load %arg3[%c0_3, %c0_4] : memref<13x27xf32, #tpu.memory_space<vmem>>, vector<13x27xf32>
    %cst_5 = arith.constant dense<0.000000e+00> : vector<13x128xf32>
    %8 = tpu.matmul %7, %6, %cst_5 {dimension_numbers = #tpu.dot_dimension_numbers<[1], [0], [0], [1], [0, 0, 1, 1], [], []>} : vector<13x27xf32>, vector<27x128xf32>, vector<13x128xf32> -> vector<13x128xf32>
    %9 = vector.extract_strided_slice %2 {offsets = [0, 0], sizes = [9, 128], strides = [1, 1]} : vector<27x128xf32> to vector<9x128xf32>
    %cst_6 = arith.constant dense<0xFF800000> : vector<128xf32>
    %10 = vector.multi_reduction <maximumf>, %9, %cst_6 [0] : vector<9x128xf32> to vector<128xf32>
    %11 = vector.shape_cast %10 : vector<128xf32> to vector<1x128xf32>
    %12 = vector.extract_strided_slice %2 {offsets = [9, 0], sizes = [9, 128], strides = [1, 1]} : vector<27x128xf32> to vector<9x128xf32>
    %cst_7 = arith.constant dense<0xFF800000> : vector<128xf32>
    %13 = vector.multi_reduction <maximumf>, %12, %cst_7 [0] : vector<9x128xf32> to vector<128xf32>
    %14 = vector.shape_cast %13 : vector<128xf32> to vector<1x128xf32>
    %15 = vector.extract_strided_slice %2 {offsets = [18, 0], sizes = [9, 128], strides = [1, 1]} : vector<27x128xf32> to vector<9x128xf32>
    %cst_8 = arith.constant dense<0xFF800000> : vector<128xf32>
    %16 = vector.multi_reduction <maximumf>, %15, %cst_8 [0] : vector<9x128xf32> to vector<128xf32>
    %17 = vector.shape_cast %16 : vector<128xf32> to vector<1x128xf32>
    %18 = tpu.concatenate %11, %14, %17 in 0 : vector<1x128xf32>, vector<1x128xf32>, vector<1x128xf32> -> vector<3x128xf32>
    %cst_9 = arith.constant dense<0.000000e+00> : vector<13xf32>
    %19 = vector.multi_reduction <add>, %8, %cst_9 [1] : vector<13x128xf32> to vector<13xf32>
    %20 = vector.shape_cast %19 : vector<13xf32> to vector<13x1xf32>
    %cst_10 = arith.constant dense<0.000000e+00> : vector<3xf32>
    %21 = vector.multi_reduction <add>, %18, %cst_10 [1] : vector<3x128xf32> to vector<3xf32>
    %22 = vector.shape_cast %21 : vector<3xf32> to vector<3x1xf32>
    %23 = tpu.concatenate %20, %22 in 0 : vector<13x1xf32>, vector<3x1xf32> -> vector<16x1xf32>
    %c0_11 = arith.constant 0 : index
    %c0_12 = arith.constant 0 : index
    %c0_13 = arith.constant 0 : index
    %c0_14 = arith.constant 0 : index
    %24 = vector.load %arg4[%c0_11, %c0_12, %c0_13, %c0_14] : memref<1x1x16x1xf32, #tpu.memory_space<vmem>>, vector<1x1x16x1xf32>
    %25 = vector.shape_cast %24 : vector<1x1x16x1xf32> to vector<16x1xf32>
    %26 = vector.shape_cast %23 : vector<16x1xf32> to vector<1x1x16x1xf32>
    tpu.vector_store %arg4[%c0_11, %c0_12, %c0_13, %c0_14], %26 {strides = array<i32>} : memref<1x1x16x1xf32, #tpu.memory_space<vmem>>, vector<1x1x16x1xf32>,
    %27 = arith.mulf %8, %8 : vector<13x128xf32>
    %cst_15 = arith.constant dense<0.000000e+00> : vector<13xf32>
    %28 = vector.multi_reduction <add>, %27, %cst_15 [1] : vector<13x128xf32> to vector<13xf32>
    %29 = vector.shape_cast %28 : vector<13xf32> to vector<13x1xf32>
    %30 = arith.mulf %18, %18 : vector<3x128xf32>
    %cst_16 = arith.constant dense<0.000000e+00> : vector<3xf32>
    %31 = vector.multi_reduction <add>, %30, %cst_16 [1] : vector<3x128xf32> to vector<3xf32>
    %32 = vector.shape_cast %31 : vector<3xf32> to vector<3x1xf32>
    %33 = tpu.concatenate %29, %32 in 0 : vector<13x1xf32>, vector<3x1xf32> -> vector<16x1xf32>
    %c0_17 = arith.constant 0 : index
    %c0_18 = arith.constant 0 : index
    %c0_19 = arith.constant 0 : index
    %c0_20 = arith.constant 0 : index
    %34 = vector.load %arg5[%c0_17, %c0_18, %c0_19, %c0_20] : memref<1x1x16x1xf32, #tpu.memory_space<vmem>>, vector<1x1x16x1xf32>
    %35 = vector.shape_cast %34 : vector<1x1x16x1xf32> to vector<16x1xf32>
    %36 = vector.shape_cast %33 : vector<16x1xf32> to vector<1x1x16x1xf32>
    tpu.vector_store %arg5[%c0_17, %c0_18, %c0_19, %c0_20], %36 {strides = array<i32>} : memref<1x1x16x1xf32, #tpu.memory_space<vmem>>, vector<1x1x16x1xf32>,
    return
  }
  func.func @transform_0(%arg0: i32, %arg1: i32) -> (i32, i32, i32) {
    %c0_i32 = arith.constant 0 : i32
    %c0_i32_0 = arith.constant 0 : i32
    return %arg0, %c0_i32, %arg1 : i32, i32, i32
  }
  func.func @transform_1(%arg0: i32, %arg1: i32) -> (i32, i32) {
    %c0_i32 = arith.constant 0 : i32
    %c0_i32_0 = arith.constant 0 : i32
    %c0_i32_1 = arith.constant 0 : i32
    return %c0_i32, %c0_i32_0 : i32, i32
  }
  func.func @transform_2(%arg0: i32, %arg1: i32) -> (i32, i32, i32, i32) {
    %c0_i32 = arith.constant 0 : i32
    %c0_i32_0 = arith.constant 0 : i32
    %c0_i32_1 = arith.constant 0 : i32
    return %arg0, %arg1, %c0_i32, %c0_i32_0 : i32, i32, i32, i32
  }
  func.func @transform_3(%arg0: i32, %arg1: i32) -> (i32, i32, i32, i32) {
    %c0_i32 = arith.constant 0 : i32
    %c0_i32_0 = arith.constant 0 : i32
    %c0_i32_1 = arith.constant 0 : i32
    return %arg0, %arg1, %c0_i32, %c0_i32_0 : i32, i32, i32, i32
  }
}

module attributes {stable_mosaic.version = 11 : i64} {
  func.func @_apply_kernel(%arg0: i32, %arg1: i32, %arg2: memref<1x27x128xbf16, #tpu.memory_space<vmem>>, %arg3: memref<13x27xf32, #tpu.memory_space<vmem>>, %arg4: memref<16x1xf32, #tpu.memory_space<vmem>>, %arg5: memref<16x1xf32, #tpu.memory_space<vmem>>, %arg6: memref<1x16x128xf32, #tpu.memory_space<vmem>>) attributes {dimension_semantics = [#tpu.dimension_semantics<parallel>, #tpu.dimension_semantics<parallel>], iteration_bounds = array<i64: 2, 1>, scalar_prefetch = 0 : i64, scratch_operands = 0 : i64, tpu.core_type = #tpu.core_type<tc>, window_params = [{transform_indices = @transform_0, window_bounds = array<i64: 1, 27, 128>}, {pipeline_mode = #tpu.pipeline_mode<synchronous>, transform_indices = @transform_1, window_bounds = array<i64: 13, 27>}, {pipeline_mode = #tpu.pipeline_mode<synchronous>, transform_indices = @transform_2, window_bounds = array<i64: 16, 1>}, {pipeline_mode = #tpu.pipeline_mode<synchronous>, transform_indices = @transform_3, window_bounds = array<i64: 16, 1>}, {transform_indices = @transform_4, window_bounds = array<i64: 1, 16, 128>}]} {
    %c0 = arith.constant 0 : index
    %c0_0 = arith.constant 0 : index
    %c0_1 = arith.constant 0 : index
    %0 = vector.load %arg2[%c0, %c0_0, %c0_1] : memref<1x27x128xbf16, #tpu.memory_space<vmem>>, vector<1x27x128xbf16>
    %1 = vector.shape_cast %0 : vector<1x27x128xbf16> to vector<27x128xbf16>
    %2 = arith.extf %1 : vector<27x128xbf16> to vector<27x128xf32>
    %cst = arith.constant 0xFF800000 : f32
    %3 = vector.broadcast %cst : f32 to vector<27x128xf32>
    %4 = arith.cmpf oeq, %2, %3 : vector<27x128xf32>
    %cst_2 = arith.constant 0.000000e+00 : f32
    %5 = vector.broadcast %cst_2 : f32 to vector<27x128xf32>
    %6 = arith.select %4, %5, %2 : vector<27x128xi1>, vector<27x128xf32>
    %c0_3 = arith.constant 0 : index
    %c0_4 = arith.constant 0 : index
    %7 = vector.load %arg3[%c0_3, %c0_4] : memref<13x27xf32, #tpu.memory_space<vmem>>, vector<13x27xf32>
    %cst_5 = arith.constant dense<0.000000e+00> : vector<13x128xf32>
    %8 = tpu.matmul %7, %6, %cst_5 {dimension_numbers = #tpu.dot_dimension_numbers<[1], [0], [0], [1], [0, 0, 1, 1], [], []>} : vector<13x27xf32>, vector<27x128xf32>, vector<13x128xf32> -> vector<13x128xf32>
    %9 = vector.extract_strided_slice %2 {offsets = [0, 0], sizes = [9, 128], strides = [1, 1]} : vector<27x128xf32> to vector<9x128xf32>
    %cst_6 = arith.constant dense<0xFF800000> : vector<128xf32>
    %10 = vector.multi_reduction <maximumf>, %9, %cst_6 [0] : vector<9x128xf32> to vector<128xf32>
    %11 = vector.shape_cast %10 : vector<128xf32> to vector<1x128xf32>
    %12 = vector.extract_strided_slice %2 {offsets = [9, 0], sizes = [9, 128], strides = [1, 1]} : vector<27x128xf32> to vector<9x128xf32>
    %cst_7 = arith.constant dense<0xFF800000> : vector<128xf32>
    %13 = vector.multi_reduction <maximumf>, %12, %cst_7 [0] : vector<9x128xf32> to vector<128xf32>
    %14 = vector.shape_cast %13 : vector<128xf32> to vector<1x128xf32>
    %15 = vector.extract_strided_slice %2 {offsets = [18, 0], sizes = [9, 128], strides = [1, 1]} : vector<27x128xf32> to vector<9x128xf32>
    %cst_8 = arith.constant dense<0xFF800000> : vector<128xf32>
    %16 = vector.multi_reduction <maximumf>, %15, %cst_8 [0] : vector<9x128xf32> to vector<128xf32>
    %17 = vector.shape_cast %16 : vector<128xf32> to vector<1x128xf32>
    %18 = tpu.concatenate %11, %14, %17 in 0 : vector<1x128xf32>, vector<1x128xf32>, vector<1x128xf32> -> vector<3x128xf32>
    %c0_9 = arith.constant 0 : index
    %c0_10 = arith.constant 0 : index
    %19 = vector.load %arg4[%c0_9, %c0_10] : memref<16x1xf32, #tpu.memory_space<vmem>>, vector<13x1xf32>
    %20 = vector.broadcast %19 : vector<13x1xf32> to vector<13x128xf32>
    %21 = arith.mulf %8, %20 : vector<13x128xf32>
    %c0_11 = arith.constant 0 : index
    %c0_12 = arith.constant 0 : index
    %22 = vector.load %arg5[%c0_11, %c0_12] : memref<16x1xf32, #tpu.memory_space<vmem>>, vector<13x1xf32>
    %23 = vector.broadcast %22 : vector<13x1xf32> to vector<13x128xf32>
    %24 = arith.addf %21, %23 : vector<13x128xf32>
    %c13 = arith.constant 13 : index
    %c0_13 = arith.constant 0 : index
    %25 = vector.load %arg4[%c13, %c0_13] : memref<16x1xf32, #tpu.memory_space<vmem>>, vector<3x1xf32>
    %26 = vector.broadcast %25 : vector<3x1xf32> to vector<3x128xf32>
    %27 = arith.mulf %18, %26 : vector<3x128xf32>
    %c13_14 = arith.constant 13 : index
    %c0_15 = arith.constant 0 : index
    %28 = vector.load %arg5[%c13_14, %c0_15] : memref<16x1xf32, #tpu.memory_space<vmem>>, vector<3x1xf32>
    %29 = vector.broadcast %28 : vector<3x1xf32> to vector<3x128xf32>
    %30 = arith.addf %27, %29 : vector<3x128xf32>
    %31 = tpu.concatenate %24, %30 in 0 : vector<13x128xf32>, vector<3x128xf32> -> vector<16x128xf32>
    %cst_16 = arith.constant 0.000000e+00 : f32
    %32 = vector.broadcast %cst_16 : f32 to vector<16x128xf32>
    %33 = arith.maximumf %31, %32 : vector<16x128xf32>
    %c0_17 = arith.constant 0 : index
    %c0_18 = arith.constant 0 : index
    %c0_19 = arith.constant 0 : index
    %34 = vector.load %arg6[%c0_17, %c0_18, %c0_19] : memref<1x16x128xf32, #tpu.memory_space<vmem>>, vector<1x16x128xf32>
    %35 = vector.shape_cast %34 : vector<1x16x128xf32> to vector<16x128xf32>
    %36 = vector.shape_cast %33 : vector<16x128xf32> to vector<1x16x128xf32>
    tpu.vector_store %arg6[%c0_17, %c0_18, %c0_19], %36 {strides = array<i32>} : memref<1x16x128xf32, #tpu.memory_space<vmem>>, vector<1x16x128xf32>,
    return
  }
  func.func @transform_0(%arg0: i32, %arg1: i32) -> (i32, i32, i32) {
    %c0_i32 = arith.constant 0 : i32
    %c0_i32_0 = arith.constant 0 : i32
    return %arg0, %c0_i32, %arg1 : i32, i32, i32
  }
  func.func @transform_1(%arg0: i32, %arg1: i32) -> (i32, i32) {
    %c0_i32 = arith.constant 0 : i32
    %c0_i32_0 = arith.constant 0 : i32
    %c0_i32_1 = arith.constant 0 : i32
    return %c0_i32, %c0_i32_0 : i32, i32
  }
  func.func @transform_2(%arg0: i32, %arg1: i32) -> (i32, i32) {
    %c0_i32 = arith.constant 0 : i32
    %c0_i32_0 = arith.constant 0 : i32
    %c0_i32_1 = arith.constant 0 : i32
    return %c0_i32, %c0_i32_0 : i32, i32
  }
  func.func @transform_3(%arg0: i32, %arg1: i32) -> (i32, i32) {
    %c0_i32 = arith.constant 0 : i32
    %c0_i32_0 = arith.constant 0 : i32
    %c0_i32_1 = arith.constant 0 : i32
    return %c0_i32, %c0_i32_0 : i32, i32
  }
  func.func @transform_4(%arg0: i32, %arg1: i32) -> (i32, i32, i32) {
    %c0_i32 = arith.constant 0 : i32
    %c0_i32_0 = arith.constant 0 : i32
    return %arg0, %c0_i32, %arg1 : i32, i32, i32
  }
}

</mosaic_0001>

<llo_original>
// kernel: initial_block.2
$region0: #{initial_block.2}
  #allocation0 [shape = 'u32[]', space=smem, size = 0x4, offset = 0x4, fixed_abs, tag = 'smem constant byte address 0x4 - core index']
  #allocation1 [shape = 'u32[144,128]{1,0:T(1,128)}', space=vmem, size = 0x12000, scoped, tag = 'internal scratch']
  %s0 = inlined_call_operand.vmem [shape: bf16[2,27,128], index: 0, kind: input, shape index: {}]
  %s1 = inlined_call_operand.vmem [shape: f32[13,27], index: 1, kind: input, shape index: {}]
  %s2 = inlined_call_operand.vmem [shape: f32[2,1,16,1], index: 2, kind: output, shape index: {0}]
  %s3 = inlined_call_operand.vmem [shape: f32[2,1,16,1], index: 3, kind: output, shape index: {1}]
  %4 = xla_tuple %s2, %s3
  %s5 = sld [smem:[#allocation0]]
  $region49: #{initial_block.2} parent=0
    _
  %s7 = ssub.s32 1, %s5
  %s8 = scalar_select 0, %s7, %s5
  loop: start=0, step=1, limit=4
  $region2: #{initial_block.2} parent=0 // loop_pre_header
    _
  $region3: #{initial_block.2} parent=0 // loop_header
    %s10 = sphi 0, %s14
    %p11 = scmp.ge.s32.totalorder %s10, 4
    %s17 = sphi 0, %s29
    %s18 = sphi 0, %s25
    %s19 = sphi 0, %s17
    %s20 = sphi 0, %s18
    %s21 = sphi 0, %s19
    %s22 = sphi 0, %s20
    %s34 = sphi 0, %s36
    %s37 = sphi 0, %s34
    %s38 = sphi 0, %s37
    %s54 = sphi 0, %s38
    %s58 = sphi 0, %s58
    %s60 = sphi 0, %s58
    %s61 = sphi 0, %s60
    %s75 = sphi 0, %s61
    %s83 = sphi 0, %s85
    %s86 = sphi 0, %s83
    %s87 = sphi 0, %s86
    %s103 = sphi 0, %s87
    %s111 = sphi 0, %s113
    %s114 = sphi 0, %s111
    %s115 = sphi 0, %s114
    %s131 = sphi 0, %s115
  $region4: #{initial_block.2} parent=0 // loop_header_branch
    %13 = sbr.rel (%p11) target = $region8
  $region5: #{initial_block.2} parent=0 // loop_body
    %s15 = ssub.s32 %s10, 1
    %s16 = ssub.s32 %s10, 2
    %s23 = sadd.s32 1, %s18
    %p24 = scmp.ge.s32.totalorder %s23, 1
    %s25 = scalar_select %p24, 0, %s23
    %s26 = sadd.s32 1, %s17
    %s27 = scalar_select %p24, %s26, %s17
    %p28 = scmp.ge.s32.totalorder %s27, 2
    %s29 = scalar_select %p28, 0, %s27
    %s30 = ssub.s32 %s17, %s29
    %s31 = ssub.s32 %s18, %s25
    %s32 = sor.u32 %s30, %s31
    %p33 = scmp.eq.s32.totalorder %s32, 0
    %s35 = sadd.s32 %s34, 1
    %s36 = scalar_select %p33, %s34, %s35
    %p39 = pneg %p33
    %p40 = scmp.eq.s32.totalorder %s10, 1
    %p41 = por %p39, %p40
    %p42 = scmp.ne.s32.totalorder %s34, %s37
    %p43 = scmp.eq.s32.totalorder %s10, 0
    %p44 = por %p42, %p43
    %p45 = scmp.ne.s32.totalorder %s34, %s37
    %p46 = scmp.eq.s32.totalorder %s15, 1
    %p47 = por %p45, %p46
    %p48 = scmp.ne.s32.totalorder %s37, %s38
    %p49 = scmp.eq.s32.totalorder %s15, 0
    %p50 = por %p48, %p49
    %p51 = scmp.ne.s32.totalorder %s37, %s38
    %p52 = scmp.eq.s32.totalorder %s16, 1
    %p53 = por %p51, %p52
    %p55 = scmp.ne.s32.totalorder %s38, %s54
    %p56 = scmp.eq.s32.totalorder %s16, 0
    %p57 = por %p55, %p56
    %s59 = sadd.s32 %s58, 1
    %p62 = scmp.eq.s32.totalorder %s10, 1
    %p63 = scmp.ne.s32.totalorder %s58, %s60
    %p64 = scmp.eq.s32.totalorder %s10, 0
    %p65 = por %p63, %p64
    %p66 = scmp.ne.s32.totalorder %s58, %s60
    %p67 = scmp.eq.s32.totalorder %s15, 1
    %p68 = por %p66, %p67
    %p69 = scmp.ne.s32.totalorder %s60, %s61
    %p70 = scmp.eq.s32.totalorder %s15, 0
    %p71 = por %p69, %p70
    %p72 = scmp.ne.s32.totalorder %s60, %s61
    %p73 = scmp.eq.s32.totalorder %s16, 1
    %p74 = por %p72, %p73
    %p76 = scmp.ne.s32.totalorder %s61, %s75
    %p77 = scmp.eq.s32.totalorder %s16, 0
    %p78 = por %p76, %p77
    %s79 = ssub.s32 %s17, %s29
    %s80 = ssub.s32 %s18, %s25
    %s81 = sor.u32 %s79, %s80
    %p82 = scmp.eq.s32.totalorder %s81, 0
    %s84 = sadd.s32 %s83, 1
    %s85 = scalar_select %p82, %s83, %s84
    %p88 = pneg %p82
    %p89 = scmp.eq.s32.totalorder %s10, 1
    %p90 = por %p88, %p89
    %p91 = scmp.ne.s32.totalorder %s83, %s86
    %p92 = scmp.eq.s32.totalorder %s10, 0
    %p93 = por %p91, %p92
    %p94 = scmp.ne.s32.totalorder %s83, %s86
    %p95 = scmp.eq.s32.totalorder %s15, 1
    %p96 = por %p94, %p95
    %p97 = scmp.ne.s32.totalorder %s86, %s87
    %p98 = scmp.eq.s32.totalorder %s15, 0
    %p99 = por %p97, %p98
    %p100 = scmp.ne.s32.totalorder %s86, %s87
    %p101 = scmp.eq.s32.totalorder %s16, 1
    %p102 = por %p100, %p101
    %p104 = scmp.ne.s32.totalorder %s87, %s103
    %p105 = scmp.eq.s32.totalorder %s16, 0
    %p106 = por %p104, %p105
    %s107 = ssub.s32 %s17, %s29
    %s108 = ssub.s32 %s18, %s25
    %s109 = sor.u32 %s107, %s108
    %p110 = scmp.eq.s32.totalorder %s109, 0
    %s112 = sadd.s32 %s111, 1
    %s113 = scalar_select %p110, %s111, %s112
    %p116 = pneg %p110
    %p117 = scmp.eq.s32.totalorder %s10, 1
    %p118 = por %p116, %p117
    %p119 = scmp.ne.s32.totalorder %s111, %s114
    %p120 = scmp.eq.s32.totalorder %s10, 0
    %p121 = por %p119, %p120
    %p122 = scmp.ne.s32.totalorder %s111, %s114
    %p123 = scmp.eq.s32.totalorder %s15, 1
    %p124 = por %p122, %p123
    %p125 = scmp.ne.s32.totalorder %s114, %s115
    %p126 = scmp.eq.s32.totalorder %s15, 0
    %p127 = por %p125, %p126
    %p128 = scmp.ne.s32.totalorder %s114, %s115
    %p129 = scmp.eq.s32.totalorder %s16, 1
    %p130 = por %p128, %p129
    %p132 = scmp.ne.s32.totalorder %s115, %s131
    %p133 = scmp.eq.s32.totalorder %s16, 0
    %p134 = por %p132, %p133
    %p135 = scmp.le.s32.totalorder 1, %s10
    %p136 = scmp.lt.s32.totalorder %s10, 3
    %p137 = pnand %p135, %p136
    %p138 = pneg %p137
    // Predicated region
    $region9: #{initial_block.2} parent=5 // pred_check
      _
    $region10: #{initial_block.2} parent=5 // pred_check_branch
      %140 = sbr.rel (%p137) target = $region12
    $region11: #{initial_block.2} parent=5 // pred_region
      %s141 = ssub.s32 %s10, 1
      // Predicated region
      $region13: #{initial_block.2} parent=11 // pred_check
        %p142 = pneg %p71
      $region14: #{initial_block.2} parent=11 // pred_check_branch
        %144 = sbr.rel (%p142) target = $region16
      $region15: #{initial_block.2} parent=11 // pred_region
        _
      $region16: #{initial_block.2} parent=11 // pred_fallthru
        _
    $region12: #{initial_block.2} parent=5 // pred_fallthru
      _
    %p145 = scmp.lt.s32.totalorder %s10, 2
    // Predicated region
    $region17: #{initial_block.2} parent=5 // pred_check
      %p146 = pneg %p145
    $region18: #{initial_block.2} parent=5 // pred_check_branch
      %148 = sbr.rel (%p146) target = $region20
    $region19: #{initial_block.2} parent=5 // pred_region
      // Predicated region
      $region21: #{initial_block.2} parent=19 // pred_check
        %p149 = pneg %p44
      $region22: #{initial_block.2} parent=19 // pred_check_branch
        %151 = sbr.rel (%p149) target = $region24
      $region23: #{initial_block.2} parent=19 // pred_region
        %p152 = scmp.lt.s32.totalorder %s17, 1
        %s153 = scalar_select %p152, %s17, 1
        %p154 = scmp.lt.s32.totalorder %s18, 0
        %s155 = scalar_select %p154, %s18, 0
        %s156 = smul.addr %s153, 4
        %s157 = sadd.s32 %s155, %s156
        %s158 = smul.addr %s157, 4
        %s159 = scalar_lea.vmem %s0, %s158
      $region24: #{initial_block.2} parent=19 // pred_fallthru
        _
    $region20: #{initial_block.2} parent=5 // pred_fallthru
      _
    %p160 = scmp.le.s32.totalorder 1, %s10
    %p161 = scmp.lt.s32.totalorder %s10, 3
    %p162 = pnand %p160, %p161
    %p163 = pneg %p162
    // Predicated region
    $region25: #{initial_block.2} parent=5 // pred_check
      _
    $region26: #{initial_block.2} parent=5 // pred_check_branch
      %165 = sbr.rel (%p162) target = $region28
    $region27: #{initial_block.2} parent=5 // pred_region
      %s166 = ssub.s32 %s10, 1
      %p167 = scmp.lt.s32.totalorder %s19, 1
      %s168 = scalar_select %p167, %s19, 1
      %p169 = scmp.lt.s32.totalorder %s20, 0
      %s170 = scalar_select %p169, %s20, 0
      %s171 = smul.addr %s168, 4
      %s172 = sadd.s32 %s170, %s171
      %s173 = smul.addr %s172, 4
      %s174 = scalar_lea.vmem %s0, %s173
      %p175 = pneg %p50
      %p176 = pneg %p47
      %p177 = pneg %p71
      %p178 = pneg %p68
      %p179 = pneg %p99
      %p180 = pneg %p96
      %p181 = scmp.lt.s32.totalorder %s19, 1
      %s182 = scalar_select %p181, %s19, 1
      %p183 = scmp.lt.s32.totalorder %s20, 0
      %s184 = scalar_select %p183, %s20, 0
      %s185 = smul.addr %s184, 2
      %s186 = smul.addr %s182, 2
      %s187 = sadd.s32 %s185, %s186
      %s188 = smul.addr %s187, 8
      %s189 = scalar_lea.vmem %s2, %s188
      %p190 = pneg %p127
      %p191 = pneg %p124
      %p192 = scmp.lt.s32.totalorder %s19, 1
      %s193 = scalar_select %p192, %s19, 1
      %p194 = scmp.lt.s32.totalorder %s20, 0
      %s195 = scalar_select %p194, %s20, 0
      %s196 = smul.addr %s195, 2
      %s197 = smul.addr %s193, 2
      %s198 = sadd.s32 %s196, %s197
      %s199 = smul.addr %s198, 8
      %s200 = scalar_lea.vmem %s3, %s199
      %p201 = scmp.lt.s32.totalorder %s19, 1
      %s202 = scalar_select %p201, %s19, 1
      %p203 = scmp.lt.s32.totalorder %s20, 0
      %s204 = scalar_select %p203, %s20, 0
      %s205 = smul.addr %s202, 4
      %s206 = sadd.s32 %s204, %s205
      %s207 = smul.addr %s206, 4
      %s208 = scalar_lea.vmem %s0, %s207
      %p209 = scmp.lt.s32.totalorder %s19, 1
      %s210 = scalar_select %p209, %s19, 1
      %p211 = scmp.lt.s32.totalorder %s20, 0
      %s212 = scalar_select %p211, %s20, 0
      %s213 = smul.addr %s212, 2
      %s214 = smul.addr %s210, 2
      %s215 = sadd.s32 %s213, %s214
      %s216 = smul.addr %s215, 8
      %s217 = scalar_lea.vmem %s2, %s216
      %p218 = scmp.lt.s32.totalorder %s19, 1
      %s219 = scalar_select %p218, %s19, 1
      %p220 = scmp.lt.s32.totalorder %s20, 0
      %s221 = scalar_select %p220, %s20, 0
      %s222 = smul.addr %s221, 2
      %s223 = smul.addr %s219, 2
      %s224 = sadd.s32 %s222, %s223
      %s225 = smul.addr %s224, 8
      %s226 = scalar_lea.vmem %s3, %s225
      %v227 = vld [vmem:[%s208] sm:$0xf]
      %v228 = vld [vmem:[%s208 + $0x4] sm:$0xf]
      %v229 = vld [vmem:[%s208 + $0x8] sm:$0xf]
      %v230 = vld [vmem:[%s208 + $0xc] sm:$0x3]
      %v231 = vunpack.c.l.bf16 %v227
      %v232 = vunpack.c.l.bf16 %v228
      %v233 = vunpack.c.l.bf16 %v229
      %v234 = vunpack.c.l.bf16 %v230
      %vm235 = vcmp.eq.f32.partialorder %v231, -inf
      %vm236 = vcmp.eq.f32.partialorder %v232, -inf
      %vm237 = vcmp.eq.f32.partialorder %v233, -inf
      %vm238 = vcmp.eq.f32.partialorder %v234, -inf
      %v239 = vsel %vm235, 0.0, %v231
      %v240 = vsel %vm236, 0.0, %v232
      %v241 = vsel %vm237, 0.0, %v233
      %v242 = vsel %vm238, 0.0, %v234
      %v243 = vld [vmem:[%s1] sm:$0xff]
      %v244 = vld [vmem:[%s1 + $0x8] sm:$0x1f]
      %vm245 = vcmask 220160
      %v247 = vsel %vm245, %v243, 0
      %v250 = vsel %vm245, %v244, 0
      %vm252 = vcmask 1042432
      %v254 = vsel %vm252, %v242, 0
      %256 = vmatprep.subr.mxu0 0.0
      %257 = vmatpush1.msra.mxu0 %v239
      %258 = vmatprep.subr.mxu0 0.0
      %259 = vmatpush1.msra.mxu0 %v240
      %260 = vmatprep.subr.mxu0 0.0
      %261 = vmatpush1.msra.mxu0 %v241
      %262 = vmatprep.subr.mxu0 0.0
      %263 = vmatpush1.msra.mxu0 %v254
      %264 = vmatprep.subr.mxu0 0.0
      %265 = vmatpush1.msra.mxu0 0.0
      %266 = vmatprep.subr.mxu0 0.0
      %267 = vmatpush1.msra.mxu0 0.0
      %268 = vmatprep.subr.mxu0 0.0
      %269 = vmatpush1.msra.mxu0 0.0
      %270 = vmatprep.subr.mxu0 0.0
      %271 = vmatpush1.msra.mxu0 0.0
      %272 = vmatprep.subr.mxu0 0.0
      %273 = vmatpush1.msra.mxu0 0.0
      %274 = vmatprep.subr.mxu0 0.0
      %275 = vmatpush1.msra.mxu0 0.0
      %276 = vmatprep.subr.mxu0 0.0
      %277 = vmatpush1.msra.mxu0 0.0
      %278 = vmatprep.subr.mxu0 0.0
      %279 = vmatpush1.msra.mxu0 0.0
      %280 = vmatprep.subr.mxu0 0.0
      %281 = vmatpush1.msra.mxu0 0.0
      %282 = vmatprep.subr.mxu0 0.0
      %283 = vmatpush1.msra.mxu0 0.0
      %284 = vmatprep.subr.mxu0 0.0
      %285 = vmatpush1.msra.mxu0 0.0
      %286 = vmatprep.subr.mxu0 0.0
      %287 = vmatpush1.msra.mxu0 0.0
      %288 = vmatprep.subr.mxu0 0.0
      %289 = vmatpush1.msra.mxu0 0.0
      %290 = vmatprep.subr.mxu0 0.0
      %291 = vmatpush1.msra.mxu0 0.0
      %292 = vmatprep.subr.mxu0 0.0
      %293 = vmatpush1.msra.mxu0 0.0
      %294 = vmatprep.subr.mxu0 0.0
      %295 = vmatpush1.msra.mxu0 0.0
      %296 = vmatprep.subr.mxu0 0.0
      %297 = vmatpush1.msra.mxu0 0.0
      %298 = vmatprep.subr.mxu0 0.0
      %299 = vmatpush1.msra.mxu0 0.0
      %300 = vmatprep.subr.mxu0 0.0
      %301 = vmatpush1.msra.mxu0 0.0
      %302 = vmatprep.subr.mxu0 0.0
      %303 = vmatpush1.msra.mxu0 0.0
      %304 = vmatprep.subr.mxu0 0.0
      %305 = vmatpush1.msra.mxu0 0.0
      %306 = vmatprep.subr.mxu0 0.0
      %307 = vmatpush1.msra.mxu0 0.0
      %308 = vmatprep.subr.mxu0 0.0
      %309 = vmatpush1.msra.mxu0 0.0
      %310 = vmatprep.subr.mxu0 0.0
      %311 = vmatpush1.msra.mxu0 0.0
      %312 = vmatprep.subr.mxu0 0.0
      %313 = vmatpush1.msra.mxu0 0.0
      %314 = vmatprep.subr.mxu0 0.0
      %315 = vmatpush1.msra.mxu0 0.0
      %316 = vmatprep.subr.mxu0 0.0
      %317 = vmatpush1.msra.mxu0 0.0
      %318 = vmatprep.subr.mxu0 0.0
      %319 = vmatpush1.msra.mxu0 0.0
      %320 = vmatprep.mubr.f32.mxu0 0.0
      %321 = vmatmul.mubr.f32.gmra.mrb[0].mxu0 %v247
      %v322 = vpop.f32.mrb[0].mxu0
      %v323 = vadd.f32 0.0, %v322
      %v324 = vpop.f32.mrb[0].mxu0
      %325 = vmatprep.mubr.f32.mxu0 0.0
      %326 = vmatmul.mubr.f32.gmra.mrb[0].mxu0 %v250
      %v327 = vpop.f32.mrb[0].mxu0
      %v328 = vadd.f32 0.0, %v327
      %v329 = vpop.f32.mrb[0].mxu0
      %330 = vdwg.mxu0
      %vm331 = vcmask 1040384
      %v332 = vsel %vm331, %v232, -inf
      %v333 = vmax.f32 %v231, %v332
      %v334 = vrot.slane %v333, 4
      %v335 = vmax.f32 %v333, %v334
      %v336 = vrot.slane %v335, 2
      %v337 = vmax.f32 %v335, %v336
      %v338 = vrot.slane %v337, 1
      %v339 = vmax.f32 %v337, %v338
      %vm340 = vcmask 1047553
      %v341 = vsel %vm340, %v232, -inf
      %vm342 = vcmask 1041408
      %v343 = vsel %vm342, %v233, -inf
      %v344 = vmax.f32 %v341, %v343
      %v345 = vrot.slane %v344, 4
      %v346 = vmax.f32 %v344, %v345
      %v347 = vrot.slane %v346, 2
      %v348 = vmax.f32 %v346, %v347
      %v349 = vrot.slane %v348, 1
      %v350 = vmax.f32 %v348, %v349
      %vm351 = vcmask 1047554
      %v352 = vsel %vm351, %v233, -inf
      %v353 = vsel %vm252, %v234, -inf
      %v354 = vmax.f32 %v352, %v353
      %v355 = vrot.slane %v354, 4
      %v356 = vmax.f32 %v354, %v355
      %v357 = vrot.slane %v356, 2
      %v358 = vmax.f32 %v356, %v357
      %v359 = vrot.slane %v358, 1
      %v360 = vmax.f32 %v358, %v359
      %v361 = vsel %vm331, %v339, %v350
      %v362 = vsel %vm342, %v361, %v360
      %363 = vadd.xlane.f32.xlu0 %v323
      %v364 = vpop.xlane.xlu0 %363
      %vm365 = vcmask 1044480
      %v366 = vsel %vm365, %v328, 0.0
      %367 = vadd.xlane.f32.xlu0 %v366
      %v368 = vpop.xlane.xlu0 %367
      %v369 = vsel %vm252, %v362, 0.0
      %370 = vadd.xlane.f32.xlu0 %v369
      %v371 = vpop.xlane.xlu0 %370
      %v373 = vrot.slane %v371, 3
      %v375 = vsel %vm365, %v368, %v373
      %vm376 = vcmask 7168
      %377 = vst.msk [vmem:[%s217] sm:$0xff] %vm376, %v364
      %378 = vst.msk [vmem:[%s217 + $0x8] sm:$0xff] %vm376, %v375
      %v379 = vmul.f32 %v323, %v323
      %v380 = vmul.f32 %v328, %v328
      %381 = vadd.xlane.f32.xlu0 %v379
      %v382 = vpop.xlane.xlu0 %381
      %v383 = vsel %vm365, %v380, 0.0
      %384 = vadd.xlane.f32.xlu0 %v383
      %v385 = vpop.xlane.xlu0 %384
      %v386 = vmul.f32 %v362, %v362
      %v387 = vsel %vm252, %v386, 0.0
      %388 = vadd.xlane.f32.xlu0 %v387
      %v389 = vpop.xlane.xlu0 %388
      %v391 = vrot.slane %v389, 3
      %v393 = vsel %vm365, %v385, %v391
      %394 = vst.msk [vmem:[%s226] sm:$0xff] %vm376, %v382
      %395 = vst.msk [vmem:[%s226 + $0x8] sm:$0xff] %vm376, %v393
      %p396 = scmp.lt.s32.totalorder %s19, 1
      %s397 = scalar_select %p396, %s19, 1
      %p398 = scmp.lt.s32.totalorder %s20, 0
      %s399 = scalar_select %p398, %s20, 0
      %s400 = smul.addr %s399, 2
      %s401 = smul.addr %s397, 2
      %s402 = sadd.s32 %s400, %s401
      %s403 = smul.addr %s402, 8
      %s404 = scalar_lea.vmem %s2, %s403
      %p405 = scmp.lt.s32.totalorder %s19, 1
      %s406 = scalar_select %p405, %s19, 1
      %p407 = scmp.lt.s32.totalorder %s20, 0
      %s408 = scalar_select %p407, %s20, 0
      %s409 = smul.addr %s408, 2
      %s410 = smul.addr %s406, 2
      %s411 = sadd.s32 %s409, %s410
      %s412 = smul.addr %s411, 8
      %s413 = scalar_lea.vmem %s3, %s412
      // Predicated region
      $region29: #{initial_block.2} parent=27 // pred_check
        %p414 = pneg %p96
      $region30: #{initial_block.2} parent=27 // pred_check_branch
        %416 = sbr.rel (%p414) target = $region32
      $region31: #{initial_block.2} parent=27 // pred_region
        _
      $region32: #{initial_block.2} parent=27 // pred_fallthru
        _
      // Predicated region
      $region33: #{initial_block.2} parent=27 // pred_check
        %p417 = pneg %p124
      $region34: #{initial_block.2} parent=27 // pred_check_branch
        %419 = sbr.rel (%p417) target = $region36
      $region35: #{initial_block.2} parent=27 // pred_region
        _
      $region36: #{initial_block.2} parent=27 // pred_fallthru
        _
    $region28: #{initial_block.2} parent=5 // pred_fallthru
      _
    %p420 = scmp.le.s32.totalorder 2, %s10
    // Predicated region
    $region37: #{initial_block.2} parent=5 // pred_check
      %p421 = pneg %p420
    $region38: #{initial_block.2} parent=5 // pred_check_branch
      %423 = sbr.rel (%p421) target = $region40
    $region39: #{initial_block.2} parent=5 // pred_region
      %s424 = ssub.s32 %s10, 2
      // Predicated region
      $region41: #{initial_block.2} parent=39 // pred_check
        %p425 = pneg %p102
      $region42: #{initial_block.2} parent=39 // pred_check_branch
        %427 = sbr.rel (%p425) target = $region44
      $region43: #{initial_block.2} parent=39 // pred_region
        %p428 = scmp.lt.s32.totalorder %s21, 1
        %s429 = scalar_select %p428, %s21, 1
        %p430 = scmp.lt.s32.totalorder %s22, 0
        %s431 = scalar_select %p430, %s22, 0
        %s432 = smul.addr %s431, 2
        %s433 = smul.addr %s429, 2
        %s434 = sadd.s32 %s432, %s433
        %s435 = smul.addr %s434, 8
        %s436 = scalar_lea.vmem %s2, %s435
      $region44: #{initial_block.2} parent=39 // pred_fallthru
        _
      // Predicated region
      $region45: #{initial_block.2} parent=39 // pred_check
        %p437 = pneg %p130
      $region46: #{initial_block.2} parent=39 // pred_check_branch
        %439 = sbr.rel (%p437) target = $region48
      $region47: #{initial_block.2} parent=39 // pred_region
        %p440 = scmp.lt.s32.totalorder %s21, 1
        %s441 = scalar_select %p440, %s21, 1
        %p442 = scmp.lt.s32.totalorder %s22, 0
        %s443 = scalar_select %p442, %s22, 0
        %s444 = smul.addr %s443, 2
        %s445 = smul.addr %s441, 2
        %s446 = sadd.s32 %s444, %s445
        %s447 = smul.addr %s446, 8
        %s448 = scalar_lea.vmem %s3, %s447
      $region48: #{initial_block.2} parent=39 // pred_fallthru
        _
    $region40: #{initial_block.2} parent=5 // pred_fallthru
      _
  $region6: #{initial_block.2} parent=0 // loop_footer
    %s14 = sadd.s32 1, %s10
  $region7: #{initial_block.2} parent=0 // loop_footer_branch
    %9 = sbr.rel target = $region3
  $region8: #{initial_block.2} parent=0 // loop_exit
    _

// kernel: initial_block.3
$region0: #{initial_block.3}
  #allocation0 [shape = 'u32[]', space=smem, size = 0x4, offset = 0x4, fixed_abs, tag = 'smem constant byte address 0x4 - core index']
  #allocation1 [shape = 'u32[144,128]{1,0:T(1,128)}', space=vmem, size = 0x12000, scoped, tag = 'internal scratch']
  %s0 = inlined_call_operand.vmem [shape: bf16[2,27,128], index: 0, kind: input, shape index: {}]
  %s1 = inlined_call_operand.vmem [shape: f32[13,27], index: 1, kind: input, shape index: {}]
  %s2 = inlined_call_operand.vmem [shape: f32[16,1], index: 2, kind: input, shape index: {}]
  %s3 = inlined_call_operand.vmem [shape: f32[16,1], index: 3, kind: input, shape index: {}]
  %s4 = inlined_call_operand.vmem [shape: f32[2,16,128], index: 4, kind: output, shape index: {}]
  %s5 = sld [smem:[#allocation0]]
  $region49: #{initial_block.3} parent=0
    _
  %s7 = ssub.s32 1, %s5
  %s8 = scalar_select 0, %s7, %s5
  loop: start=0, step=1, limit=4
  $region2: #{initial_block.3} parent=0 // loop_pre_header
    _
  $region3: #{initial_block.3} parent=0 // loop_header
    %s10 = sphi 0, %s14
    %p11 = scmp.ge.s32.totalorder %s10, 4
    %s17 = sphi 0, %s29
    %s18 = sphi 0, %s25
    %s19 = sphi 0, %s17
    %s20 = sphi 0, %s18
    %s21 = sphi 0, %s19
    %s22 = sphi 0, %s20
    %s34 = sphi 0, %s36
    %s37 = sphi 0, %s34
    %s38 = sphi 0, %s37
    %s54 = sphi 0, %s38
    %s58 = sphi 0, %s58
    %s60 = sphi 0, %s58
    %s61 = sphi 0, %s60
    %s75 = sphi 0, %s61
    %s79 = sphi 0, %s79
    %s81 = sphi 0, %s79
    %s82 = sphi 0, %s81
    %s96 = sphi 0, %s82
    %s100 = sphi 0, %s100
    %s102 = sphi 0, %s100
    %s103 = sphi 0, %s102
    %s117 = sphi 0, %s103
    %s125 = sphi 0, %s127
    %s128 = sphi 0, %s125
    %s129 = sphi 0, %s128
    %s145 = sphi 0, %s129
  $region4: #{initial_block.3} parent=0 // loop_header_branch
    %13 = sbr.rel (%p11) target = $region8
  $region5: #{initial_block.3} parent=0 // loop_body
    %s15 = ssub.s32 %s10, 1
    %s16 = ssub.s32 %s10, 2
    %s23 = sadd.s32 1, %s18
    %p24 = scmp.ge.s32.totalorder %s23, 1
    %s25 = scalar_select %p24, 0, %s23
    %s26 = sadd.s32 1, %s17
    %s27 = scalar_select %p24, %s26, %s17
    %p28 = scmp.ge.s32.totalorder %s27, 2
    %s29 = scalar_select %p28, 0, %s27
    %s30 = ssub.s32 %s17, %s29
    %s31 = ssub.s32 %s18, %s25
    %s32 = sor.u32 %s30, %s31
    %p33 = scmp.eq.s32.totalorder %s32, 0
    %s35 = sadd.s32 %s34, 1
    %s36 = scalar_select %p33, %s34, %s35
    %p39 = pneg %p33
    %p40 = scmp.eq.s32.totalorder %s10, 1
    %p41 = por %p39, %p40
    %p42 = scmp.ne.s32.totalorder %s34, %s37
    %p43 = scmp.eq.s32.totalorder %s10, 0
    %p44 = por %p42, %p43
    %p45 = scmp.ne.s32.totalorder %s34, %s37
    %p46 = scmp.eq.s32.totalorder %s15, 1
    %p47 = por %p45, %p46
    %p48 = scmp.ne.s32.totalorder %s37, %s38
    %p49 = scmp.eq.s32.totalorder %s15, 0
    %p50 = por %p48, %p49
    %p51 = scmp.ne.s32.totalorder %s37, %s38
    %p52 = scmp.eq.s32.totalorder %s16, 1
    %p53 = por %p51, %p52
    %p55 = scmp.ne.s32.totalorder %s38, %s54
    %p56 = scmp.eq.s32.totalorder %s16, 0
    %p57 = por %p55, %p56
    %s59 = sadd.s32 %s58, 1
    %p62 = scmp.eq.s32.totalorder %s10, 1
    %p63 = scmp.ne.s32.totalorder %s58, %s60
    %p64 = scmp.eq.s32.totalorder %s10, 0
    %p65 = por %p63, %p64
    %p66 = scmp.ne.s32.totalorder %s58, %s60
    %p67 = scmp.eq.s32.totalorder %s15, 1
    %p68 = por %p66, %p67
    %p69 = scmp.ne.s32.totalorder %s60, %s61
    %p70 = scmp.eq.s32.totalorder %s15, 0
    %p71 = por %p69, %p70
    %p72 = scmp.ne.s32.totalorder %s60, %s61
    %p73 = scmp.eq.s32.totalorder %s16, 1
    %p74 = por %p72, %p73
    %p76 = scmp.ne.s32.totalorder %s61, %s75
    %p77 = scmp.eq.s32.totalorder %s16, 0
    %p78 = por %p76, %p77
    %s80 = sadd.s32 %s79, 1
    %p83 = scmp.eq.s32.totalorder %s10, 1
    %p84 = scmp.ne.s32.totalorder %s79, %s81
    %p85 = scmp.eq.s32.totalorder %s10, 0
    %p86 = por %p84, %p85
    %p87 = scmp.ne.s32.totalorder %s79, %s81
    %p88 = scmp.eq.s32.totalorder %s15, 1
    %p89 = por %p87, %p88
    %p90 = scmp.ne.s32.totalorder %s81, %s82
    %p91 = scmp.eq.s32.totalorder %s15, 0
    %p92 = por %p90, %p91
    %p93 = scmp.ne.s32.totalorder %s81, %s82
    %p94 = scmp.eq.s32.totalorder %s16, 1
    %p95 = por %p93, %p94
    %p97 = scmp.ne.s32.totalorder %s82, %s96
    %p98 = scmp.eq.s32.totalorder %s16, 0
    %p99 = por %p97, %p98
    %s101 = sadd.s32 %s100, 1
    %p104 = scmp.eq.s32.totalorder %s10, 1
    %p105 = scmp.ne.s32.totalorder %s100, %s102
    %p106 = scmp.eq.s32.totalorder %s10, 0
    %p107 = por %p105, %p106
    %p108 = scmp.ne.s32.totalorder %s100, %s102
    %p109 = scmp.eq.s32.totalorder %s15, 1
    %p110 = por %p108, %p109
    %p111 = scmp.ne.s32.totalorder %s102, %s103
    %p112 = scmp.eq.s32.totalorder %s15, 0
    %p113 = por %p111, %p112
    %p114 = scmp.ne.s32.totalorder %s102, %s103
    %p115 = scmp.eq.s32.totalorder %s16, 1
    %p116 = por %p114, %p115
    %p118 = scmp.ne.s32.totalorder %s103, %s117
    %p119 = scmp.eq.s32.totalorder %s16, 0
    %p120 = por %p118, %p119
    %s121 = ssub.s32 %s17, %s29
    %s122 = ssub.s32 %s18, %s25
    %s123 = sor.u32 %s121, %s122
    %p124 = scmp.eq.s32.totalorder %s123, 0
    %s126 = sadd.s32 %s125, 1
    %s127 = scalar_select %p124, %s125, %s126
    %p130 = pneg %p124
    %p131 = scmp.eq.s32.totalorder %s10, 1
    %p132 = por %p130, %p131
    %p133 = scmp.ne.s32.totalorder %s125, %s128
    %p134 = scmp.eq.s32.totalorder %s10, 0
    %p135 = por %p133, %p134
    %p136 = scmp.ne.s32.totalorder %s125, %s128
    %p137 = scmp.eq.s32.totalorder %s15, 1
    %p138 = por %p136, %p137
    %p139 = scmp.ne.s32.totalorder %s128, %s129
    %p140 = scmp.eq.s32.totalorder %s15, 0
    %p141 = por %p139, %p140
    %p142 = scmp.ne.s32.totalorder %s128, %s129
    %p143 = scmp.eq.s32.totalorder %s16, 1
    %p144 = por %p142, %p143
    %p146 = scmp.ne.s32.totalorder %s129, %s145
    %p147 = scmp.eq.s32.totalorder %s16, 0
    %p148 = por %p146, %p147
    %p149 = scmp.le.s32.totalorder 1, %s10
    %p150 = scmp.lt.s32.totalorder %s10, 3
    %p151 = pnand %p149, %p150
    %p152 = pneg %p151
    // Predicated region
    $region9: #{initial_block.3} parent=5 // pred_check
      _
    $region10: #{initial_block.3} parent=5 // pred_check_branch
      %154 = sbr.rel (%p151) target = $region12
    $region11: #{initial_block.3} parent=5 // pred_region
      %s155 = ssub.s32 %s10, 1
      // Predicated region
      $region13: #{initial_block.3} parent=11 // pred_check
        %p156 = pneg %p71
      $region14: #{initial_block.3} parent=11 // pred_check_branch
        %158 = sbr.rel (%p156) target = $region16
      $region15: #{initial_block.3} parent=11 // pred_region
        _
      $region16: #{initial_block.3} parent=11 // pred_fallthru
        _
      // Predicated region
      $region17: #{initial_block.3} parent=11 // pred_check
        %p159 = pneg %p92
      $region18: #{initial_block.3} parent=11 // pred_check_branch
        %161 = sbr.rel (%p159) target = $region20
      $region19: #{initial_block.3} parent=11 // pred_region
        _
      $region20: #{initial_block.3} parent=11 // pred_fallthru
        _
      // Predicated region
      $region21: #{initial_block.3} parent=11 // pred_check
        %p162 = pneg %p113
      $region22: #{initial_block.3} parent=11 // pred_check_branch
        %164 = sbr.rel (%p162) target = $region24
      $region23: #{initial_block.3} parent=11 // pred_region
        _
      $region24: #{initial_block.3} parent=11 // pred_fallthru
        _
    $region12: #{initial_block.3} parent=5 // pred_fallthru
      _
    %p165 = scmp.lt.s32.totalorder %s10, 2
    // Predicated region
    $region25: #{initial_block.3} parent=5 // pred_check
      %p166 = pneg %p165
    $region26: #{initial_block.3} parent=5 // pred_check_branch
      %168 = sbr.rel (%p166) target = $region28
    $region27: #{initial_block.3} parent=5 // pred_region
      // Predicated region
      $region29: #{initial_block.3} parent=27 // pred_check
        %p169 = pneg %p44
      $region30: #{initial_block.3} parent=27 // pred_check_branch
        %171 = sbr.rel (%p169) target = $region32
      $region31: #{initial_block.3} parent=27 // pred_region
        %p172 = scmp.lt.s32.totalorder %s17, 1
        %s173 = scalar_select %p172, %s17, 1
        %p174 = scmp.lt.s32.totalorder %s18, 0
        %s175 = scalar_select %p174, %s18, 0
        %s176 = smul.addr %s173, 4
        %s177 = sadd.s32 %s175, %s176
        %s178 = smul.addr %s177, 4
        %s179 = scalar_lea.vmem %s0, %s178
      $region32: #{initial_block.3} parent=27 // pred_fallthru
        _
    $region28: #{initial_block.3} parent=5 // pred_fallthru
      _
    %p180 = scmp.le.s32.totalorder 1, %s10
    %p181 = scmp.lt.s32.totalorder %s10, 3
    %p182 = pnand %p180, %p181
    %p183 = pneg %p182
    // Predicated region
    $region33: #{initial_block.3} parent=5 // pred_check
      _
    $region34: #{initial_block.3} parent=5 // pred_check_branch
      %185 = sbr.rel (%p182) target = $region36
    $region35: #{initial_block.3} parent=5 // pred_region
      %s186 = ssub.s32 %s10, 1
      %p187 = scmp.lt.s32.totalorder %s19, 1
      %s188 = scalar_select %p187, %s19, 1
      %p189 = scmp.lt.s32.totalorder %s20, 0
      %s190 = scalar_select %p189, %s20, 0
      %s191 = smul.addr %s188, 4
      %s192 = sadd.s32 %s190, %s191
      %s193 = smul.addr %s192, 4
      %s194 = scalar_lea.vmem %s0, %s193
      %p195 = pneg %p50
      %p196 = pneg %p47
      %p197 = pneg %p71
      %p198 = pneg %p68
      %p199 = pneg %p92
      %p200 = pneg %p89
      %p201 = pneg %p113
      %p202 = pneg %p110
      %p203 = pneg %p141
      %p204 = pneg %p138
      %p205 = scmp.lt.s32.totalorder %s19, 1
      %s206 = scalar_select %p205, %s19, 1
      %p207 = scmp.lt.s32.totalorder %s20, 0
      %s208 = scalar_select %p207, %s20, 0
      %s209 = smul.addr %s206, 2
      %s210 = sadd.s32 %s208, %s209
      %s211 = smul.addr %s210, 8
      %s212 = scalar_lea.vmem %s4, %s211
      %p213 = scmp.lt.s32.totalorder %s19, 1
      %s214 = scalar_select %p213, %s19, 1
      %p215 = scmp.lt.s32.totalorder %s20, 0
      %s216 = scalar_select %p215, %s20, 0
      %s217 = smul.addr %s214, 4
      %s218 = sadd.s32 %s216, %s217
      %s219 = smul.addr %s218, 4
      %s220 = scalar_lea.vmem %s0, %s219
      %p221 = scmp.lt.s32.totalorder %s19, 1
      %s222 = scalar_select %p221, %s19, 1
      %p223 = scmp.lt.s32.totalorder %s20, 0
      %s224 = scalar_select %p223, %s20, 0
      %s225 = smul.addr %s222, 2
      %s226 = sadd.s32 %s224, %s225
      %s227 = smul.addr %s226, 8
      %s228 = scalar_lea.vmem %s4, %s227
      %v229 = vld [vmem:[%s220] sm:$0xf]
      %v230 = vld [vmem:[%s220 + $0x4] sm:$0xf]
      %v231 = vld [vmem:[%s220 + $0x8] sm:$0xf]
      %v232 = vld [vmem:[%s220 + $0xc] sm:$0x3]
      %v233 = vunpack.c.l.bf16 %v229
      %v234 = vunpack.c.l.bf16 %v230
      %v235 = vunpack.c.l.bf16 %v231
      %v236 = vunpack.c.l.bf16 %v232
      %vm237 = vcmp.eq.f32.partialorder %v233, -inf
      %vm238 = vcmp.eq.f32.partialorder %v234, -inf
      %vm239 = vcmp.eq.f32.partialorder %v235, -inf
      %vm240 = vcmp.eq.f32.partialorder %v236, -inf
      %v241 = vsel %vm237, 0.0, %v233
      %v242 = vsel %vm238, 0.0, %v234
      %v243 = vsel %vm239, 0.0, %v235
      %v244 = vsel %vm240, 0.0, %v236
      %v245 = vld [vmem:[%s1] sm:$0xff]
      %v246 = vld [vmem:[%s1 + $0x8] sm:$0x1f]
      %vm247 = vcmask 220160
      %v249 = vsel %vm247, %v245, 0
      %v252 = vsel %vm247, %v246, 0
      %vm254 = vcmask 1042432
      %v256 = vsel %vm254, %v244, 0
      %258 = vmatprep.subr.mxu0 0.0
      %259 = vmatpush1.msra.mxu0 %v241
      %260 = vmatprep.subr.mxu0 0.0
      %261 = vmatpush1.msra.mxu0 %v242
      %262 = vmatprep.subr.mxu0 0.0
      %263 = vmatpush1.msra.mxu0 %v243
      %264 = vmatprep.subr.mxu0 0.0
      %265 = vmatpush1.msra.mxu0 %v256
      %266 = vmatprep.subr.mxu0 0.0
      %267 = vmatpush1.msra.mxu0 0.0
      %268 = vmatprep.subr.mxu0 0.0
      %269 = vmatpush1.msra.mxu0 0.0
      %270 = vmatprep.subr.mxu0 0.0
      %271 = vmatpush1.msra.mxu0 0.0
      %272 = vmatprep.subr.mxu0 0.0
      %273 = vmatpush1.msra.mxu0 0.0
      %274 = vmatprep.subr.mxu0 0.0
      %275 = vmatpush1.msra.mxu0 0.0
      %276 = vmatprep.subr.mxu0 0.0
      %277 = vmatpush1.msra.mxu0 0.0
      %278 = vmatprep.subr.mxu0 0.0
      %279 = vmatpush1.msra.mxu0 0.0
      %280 = vmatprep.subr.mxu0 0.0
      %281 = vmatpush1.msra.mxu0 0.0
      %282 = vmatprep.subr.mxu0 0.0
      %283 = vmatpush1.msra.mxu0 0.0
      %284 = vmatprep.subr.mxu0 0.0
      %285 = vmatpush1.msra.mxu0 0.0
      %286 = vmatprep.subr.mxu0 0.0
      %287 = vmatpush1.msra.mxu0 0.0
      %288 = vmatprep.subr.mxu0 0.0
      %289 = vmatpush1.msra.mxu0 0.0
      %290 = vmatprep.subr.mxu0 0.0
      %291 = vmatpush1.msra.mxu0 0.0
      %292 = vmatprep.subr.mxu0 0.0
      %293 = vmatpush1.msra.mxu0 0.0
      %294 = vmatprep.subr.mxu0 0.0
      %295 = vmatpush1.msra.mxu0 0.0
      %296 = vmatprep.subr.mxu0 0.0
      %297 = vmatpush1.msra.mxu0 0.0
      %298 = vmatprep.subr.mxu0 0.0
      %299 = vmatpush1.msra.mxu0 0.0
      %300 = vmatprep.subr.mxu0 0.0
      %301 = vmatpush1.msra.mxu0 0.0
      %302 = vmatprep.subr.mxu0 0.0
      %303 = vmatpush1.msra.mxu0 0.0
      %304 = vmatprep.subr.mxu0 0.0
      %305 = vmatpush1.msra.mxu0 0.0
      %306 = vmatprep.subr.mxu0 0.0
      %307 = vmatpush1.msra.mxu0 0.0
      %308 = vmatprep.subr.mxu0 0.0
      %309 = vmatpush1.msra.mxu0 0.0
      %310 = vmatprep.subr.mxu0 0.0
      %311 = vmatpush1.msra.mxu0 0.0
      %312 = vmatprep.subr.mxu0 0.0
      %313 = vmatpush1.msra.mxu0 0.0
      %314 = vmatprep.subr.mxu0 0.0
      %315 = vmatpush1.msra.mxu0 0.0
      %316 = vmatprep.subr.mxu0 0.0
      %317 = vmatpush1.msra.mxu0 0.0
      %318 = vmatprep.subr.mxu0 0.0
      %319 = vmatpush1.msra.mxu0 0.0
      %320 = vmatprep.subr.mxu0 0.0
      %321 = vmatpush1.msra.mxu0 0.0
      %322 = vmatprep.mubr.f32.mxu0 0.0
      %323 = vmatmul.mubr.f32.gmra.mrb[0].mxu0 %v249
      %v324 = vpop.f32.mrb[0].mxu0
      %v325 = vadd.f32 0.0, %v324
      %v326 = vpop.f32.mrb[0].mxu0
      %327 = vmatprep.mubr.f32.mxu0 0.0
      %328 = vmatmul.mubr.f32.gmra.mrb[0].mxu0 %v252
      %v329 = vpop.f32.mrb[0].mxu0
      %v330 = vadd.f32 0.0, %v329
      %v331 = vpop.f32.mrb[0].mxu0
      %332 = vdwg.mxu0
      %vm333 = vcmask 1040384
      %v334 = vsel %vm333, %v234, -inf
      %v335 = vmax.f32 %v233, %v334
      %v336 = vrot.slane %v335, 4
      %v337 = vmax.f32 %v335, %v336
      %v338 = vrot.slane %v337, 2
      %v339 = vmax.f32 %v337, %v338
      %v340 = vrot.slane %v339, 1
      %v341 = vmax.f32 %v339, %v340
      %vm342 = vcmask 1047553
      %v343 = vsel %vm342, %v234, -inf
      %vm344 = vcmask 1041408
      %v345 = vsel %vm344, %v235, -inf
      %v346 = vmax.f32 %v343, %v345
      %v347 = vrot.slane %v346, 4
      %v348 = vmax.f32 %v346, %v347
      %v349 = vrot.slane %v348, 2
      %v350 = vmax.f32 %v348, %v349
      %v351 = vrot.slane %v350, 1
      %v352 = vmax.f32 %v350, %v351
      %vm353 = vcmask 1047554
      %v354 = vsel %vm353, %v235, -inf
      %v355 = vsel %vm254, %v236, -inf
      %v356 = vmax.f32 %v354, %v355
      %v357 = vrot.slane %v356, 4
      %v358 = vmax.f32 %v356, %v357
      %v359 = vrot.slane %v358, 2
      %v360 = vmax.f32 %v358, %v359
      %v361 = vrot.slane %v360, 1
      %v362 = vmax.f32 %v360, %v361
      %v363 = vsel %vm333, %v341, %v352
      %v364 = vsel %vm344, %v363, %v362
      %v365 = vld [vmem:[%s2] sm:$0xff]
      %v366 = vld [vmem:[%s2 + $0x8] sm:$0x1f]
      %368 = vset.pattern.permute.xlu0 0
      %369 = vperm.xlu0 %368, %v365
      %v370 = vpop.permute.xlu0 %369
      %373 = vset.pattern.permute.xlu0 0
      %374 = vperm.xlu0 %373, %v366
      %v375 = vpop.permute.xlu0 %374
      %v377 = vmul.f32 %v325, %v370
      %v378 = vmul.f32 %v330, %v375
      %v379 = vld [vmem:[%s3] sm:$0xff]
      %v380 = vld [vmem:[%s3 + $0x8] sm:$0x1f]
      %382 = vset.pattern.permute.xlu0 0
      %383 = vperm.xlu0 %382, %v379
      %v384 = vpop.permute.xlu0 %383
      %387 = vset.pattern.permute.xlu0 0
      %388 = vperm.xlu0 %387, %v380
      %v389 = vpop.permute.xlu0 %388
      %v391 = vadd.f32 %v377, %v384
      %v392 = vadd.f32 %v378, %v389
      %v393 = vld [vmem:[%s2 + $0xd] sm:$0x7]
      %395 = vset.pattern.permute.xlu0 0
      %396 = vperm.xlu0 %395, %v393
      %v397 = vpop.permute.xlu0 %396
      %v399 = vmul.f32 %v364, %v397
      %v400 = vld [vmem:[%s3 + $0xd] sm:$0x7]
      %402 = vset.pattern.permute.xlu0 0
      %403 = vperm.xlu0 %402, %v400
      %v404 = vpop.permute.xlu0 %403
      %v406 = vadd.f32 %v399, %v404
      %v408 = vrot.slane %v406, 3
      %vm410 = vcmask 1044480
      %v411 = vsel %vm410, %v392, %v408
      %v412 = vmax.f32 %v391, 0.0
      %v413 = vmax.f32 %v411, 0.0
      %414 = vst [vmem:[%s228] sm:$0xff] %v412
      %415 = vst [vmem:[%s228 + $0x8] sm:$0xff] %v413
      %p416 = scmp.lt.s32.totalorder %s19, 1
      %s417 = scalar_select %p416, %s19, 1
      %p418 = scmp.lt.s32.totalorder %s20, 0
      %s419 = scalar_select %p418, %s20, 0
      %s420 = smul.addr %s417, 2
      %s421 = sadd.s32 %s419, %s420
      %s422 = smul.addr %s421, 8
      %s423 = scalar_lea.vmem %s4, %s422
      // Predicated region
      $region37: #{initial_block.3} parent=35 // pred_check
        %p424 = pneg %p138
      $region38: #{initial_block.3} parent=35 // pred_check_branch
        %426 = sbr.rel (%p424) target = $region40
      $region39: #{initial_block.3} parent=35 // pred_region
        _
      $region40: #{initial_block.3} parent=35 // pred_fallthru
        _
    $region36: #{initial_block.3} parent=5 // pred_fallthru
      _
    %p427 = scmp.le.s32.totalorder 2, %s10
    // Predicated region
    $region41: #{initial_block.3} parent=5 // pred_check
      %p428 = pneg %p427
    $region42: #{initial_block.3} parent=5 // pred_check_branch
      %430 = sbr.rel (%p428) target = $region44
    $region43: #{initial_block.3} parent=5 // pred_region
      %s431 = ssub.s32 %s10, 2
      // Predicated region
      $region45: #{initial_block.3} parent=43 // pred_check
        %p432 = pneg %p144
      $region46: #{initial_block.3} parent=43 // pred_check_branch
        %434 = sbr.rel (%p432) target = $region48
      $region47: #{initial_block.3} parent=43 // pred_region
        %p435 = scmp.lt.s32.totalorder %s21, 1
        %s436 = scalar_select %p435, %s21, 1
        %p437 = scmp.lt.s32.totalorder %s22, 0
        %s438 = scalar_select %p437, %s22, 0
        %s439 = smul.addr %s436, 2
        %s440 = sadd.s32 %s438, %s439
        %s441 = smul.addr %s440, 8
        %s442 = scalar_lea.vmem %s4, %s441
      $region48: #{initial_block.3} parent=43 // pred_fallthru
        _
    $region44: #{initial_block.3} parent=5 // pred_fallthru
      _
  $region6: #{initial_block.3} parent=0 // loop_footer
    %s14 = sadd.s32 1, %s10
  $region7: #{initial_block.3} parent=0 // loop_footer_branch
    %9 = sbr.rel target = $region3
  $region8: #{initial_block.3} parent=0 // loop_exit
    _

</llo_original>
